<compile_context>
chip_gen: v7x
topology: tpu7x:2x2x1
jax: 0.10.0
libtpu: 0.0.40
codegen_flags: <defaults>
</compile_context>

<pallas_src>
import functools
import math

import jax
import jax.numpy as jnp
from jax.experimental import pallas as pl
from jax.experimental.pallas import tpu as pltpu

# v7x has only 64 MiB VMEM per TensorCore; request well below it (harmless headroom
# on v5e/v6e which have 128 MiB).
_VMEM_LIMIT = 48 * 1024 * 1024


# ---------------------------------------------------------------------------
# helpers
# ---------------------------------------------------------------------------
def _gelu(x):
    # exact (erf-based) GELU == torch.nn.functional.gelu default
    return 0.5 * x * (1.0 + jax.lax.erf(x * (1.0 / math.sqrt(2.0))))


def _round_up(x, m):
    return ((x + m - 1) // m) * m


def _pad2(a, rows, cols):
    return jnp.pad(a, ((0, rows - a.shape[0]), (0, cols - a.shape[1])))


def _pad1(v, n, value=0.0):
    return jnp.pad(v, (0, n - v.shape[0]), constant_values=value)


def _deg_scales(a):
    # DGL GraphConv(norm='both') per-relation degrees, clamped at 1.
    dout = jax.lax.rsqrt(jnp.maximum(jnp.sum(a, axis=0), 1.0))  # [n_src]
    din = jax.lax.rsqrt(jnp.maximum(jnp.sum(a, axis=1), 1.0))   # [n_dst]
    return din, dout


# ---------------------------------------------------------------------------
# kernel 1: per-type HeteroLinear + GELU  (bf16 in, bf16 lane-dense out)
# ---------------------------------------------------------------------------
def _lin1_kernel(h_ref, w_ref, b_ref, o_ref):
    y = jnp.dot(h_ref[...], w_ref[...], preferred_element_type=jnp.float32) + b_ref[...]
    o_ref[...] = _gelu(y).astype(jnp.bfloat16)


def _lin1_call(x, w, b, tile_m):
    n, f = x.shape
    return pl.pallas_call(
        _lin1_kernel,
        out_shape=jax.ShapeDtypeStruct((n, f), jnp.bfloat16),
        grid=(n // tile_m,),
        in_specs=[
            pl.BlockSpec((tile_m, f), lambda i: (i, 0)),
            pl.BlockSpec((f, f), lambda i: (0, 0)),
            pl.BlockSpec((1, f), lambda i: (0, 0)),
        ],
        out_specs=pl.BlockSpec((tile_m, f), lambda i: (i, 0)),
        compiler_params=pltpu.CompilerParams(
            dimension_semantics=("parallel",),
            vmem_limit_bytes=_VMEM_LIMIT),
    )(x, w, b)


# ---------------------------------------------------------------------------
# kernel 2: HeteroGraphConv (sum over relations) + GELU + HeteroLinear + GELU
#           + residual, per destination node type.
#   grid = (dst tiles [parallel], src tiles [arbitrary/reduction])
#   src axis spans [cell sources | net sources]; per-segment accumulation lets
#   the two per-relation weight matmuls fuse into one K = 2*F push at finalize.
#   A is int8 in HBM (0/1 exact), cast to bf16 on the fly; h1 arrives pre-scaled
#   by deg_out^-1/2, deg_in^-1/2 is applied once at finalize.
# ---------------------------------------------------------------------------
def _conv_kernel(a_ref, h1_ref, dinc_ref, dinn_ref,
                 wcat_ref, bconv_ref, w2_ref, b2_ref, hres_ref,
                 o_ref, acc_ref, *, F, n_src_cell_tiles):
    k = pl.program_id(1)

    @pl.when(k == 0)
    def _init():
        acc_ref[...] = jnp.zeros_like(acc_ref)

    # int8 -> bf16 cast is a cheap VPU pass hidden under the A DMA; MXU runs bf16
    # with f32 accumulation.
    part = jnp.dot(a_ref[...].astype(jnp.bfloat16), h1_ref[...],
                   preferred_element_type=jnp.float32)

    @pl.when(k < n_src_cell_tiles)
    def _acc_cell():
        acc_ref[:, 0:F] = acc_ref[:, 0:F] + part

    @pl.when(k >= n_src_cell_tiles)
    def _acc_net():
        acc_ref[:, F:2 * F] = acc_ref[:, F:2 * F] + part

    @pl.when(k == pl.num_programs(1) - 1)
    def _finalize():
        # relation-specific deg_in^-1/2 on the aggregated messages (once per dst tile)
        acc_ref[:, 0:F] = acc_ref[:, 0:F] * dinc_ref[...]
        acc_ref[:, F:2 * F] = acc_ref[:, F:2 * F] * dinn_ref[...]
        z = acc_ref[...].astype(jnp.bfloat16)                       # [tile_d, 2F]
        # fused per-relation GraphConv weights: single K = 2F matmul
        g = _gelu(jnp.dot(z, wcat_ref[...], preferred_element_type=jnp.float32)
                  + bconv_ref[...])
        h2 = _gelu(jnp.dot(g.astype(jnp.bfloat16), w2_ref[...],
                           preferred_element_type=jnp.float32) + b2_ref[...])
        o_ref[...] = hres_ref[...] + h2


def _conv_call(a, h1s, din_c, din_n, w_cat, b_conv, w2, b2, h_res,
               tile_d, tile_s, F, G, n_src_cell_tiles):
    n_dst, n_src = a.shape
    n_src_tiles = n_src // tile_s
    # 3-deep buffering on the two streamed inputs (only when the reduction axis is
    # long enough for it to be meaningful).
    stream_mode = pl.Buffered(3) if n_src_tiles >= 3 else None
    kernel = functools.partial(_conv_kernel, F=F,
                               n_src_cell_tiles=n_src_cell_tiles)
    return pl.pallas_call(
        kernel,
        out_shape=jax.ShapeDtypeStruct((n_dst, F), jnp.float32),
        grid=(n_dst // tile_d, n_src_tiles),
        in_specs=[
            pl.BlockSpec((tile_d, tile_s), lambda i, k: (i, k),
                         pipeline_mode=stream_mode),                # A (raw 0/1, int8)
            pl.BlockSpec((tile_s, F), lambda i, k: (k, 0),
                         pipeline_mode=stream_mode),                # h1 * deg_out^-1/2 (bf16)
            pl.BlockSpec((tile_d, 1), lambda i, k: (i, 0)),         # deg_in^-1/2 (cell rel)
            pl.BlockSpec((tile_d, 1), lambda i, k: (i, 0)),         # deg_in^-1/2 (net rel)
            pl.BlockSpec((2 * F, G), lambda i, k: (0, 0)),          # fused conv weights
            pl.BlockSpec((1, G), lambda i, k: (0, 0)),              # pre-summed conv bias
            pl.BlockSpec((G, F), lambda i, k: (0, 0)),              # lin2 weight
            pl.BlockSpec((1, F), lambda i, k: (0, 0)),              # lin2 bias
            pl.BlockSpec((tile_d, F), lambda i, k: (i, 0)),         # residual features
        ],
        out_specs=pl.BlockSpec((tile_d, F), lambda i, k: (i, 0)),
        scratch_shapes=[pltpu.VMEM((tile_d, 2 * F), jnp.float32)],
        compiler_params=pltpu.CompilerParams(
            dimension_semantics=("parallel", "arbitrary"),
            vmem_limit_bytes=_VMEM_LIMIT),
    )(a, h1s, din_c, din_n, w_cat, b_conv, w2, b2, h_res)


# ---------------------------------------------------------------------------
# wrapper
# ---------------------------------------------------------------------------
def rgcn_forward(h, adjs, params, *, tile_d=1024, tile_s=2048, tile_m=512):
    # Defaults sized for real graphs: double/triple-buffered working set ~12 MiB,
    # safe on v7x's 64 MiB VMEM. On v5e/v6e (128 MiB) tiles up to ~2x larger are
    # also fine; for v7x keep n_dst/tile_d >= 2 so both TensorCores get work.
    f32, bf16 = jnp.float32, jnp.bfloat16

    hc, hn = h["Gcell"], h["Gnet"]
    n_cell, dim = hc.shape
    n_net = hn.shape[0]
    hid = 2 * dim

    # lane-dense padding of the feature dims.
    # TODO(synk): if the deployed dim stays << 128, keep features at true width
    # (block last-dim == full array dim is legal) to cut the h1/residual/output
    # streams ~4x at the cost of masked partial stores.
    F = _round_up(dim, 128)    # node feature dim
    G = _round_up(hid, 128)    # conv hidden dim

    # Clamp the src tile to the (padded) problem so small graphs don't over-pad;
    # must stay a multiple of 128 (lane dim / int8 layout).
    tile_s = min(tile_s, _round_up(max(n_cell, n_net), 128))
    assert tile_s % 128 == 0

    nc_s, nn_s = _round_up(n_cell, tile_s), _round_up(n_net, tile_s)
    n_src_cell_tiles = nc_s // tile_s

    # ---- stage 1: lin1 + GELU per node type (bf16 in / bf16 out, lane-dense) ----
    def lin1(x, w, b):
        n = x.shape[0]
        tm = min(tile_m, _round_up(n, 8))
        n_pad = _round_up(n, tm)
        x_p = _pad2(x, n_pad, F).astype(bf16)       # bf16 input: halves lin1 HBM read
        w_p = _pad2(w, F, F).astype(bf16)
        b_p = _pad2(b, 1, F).astype(f32)
        return _lin1_call(x_p, w_p, b_p, tile_m=tm)[:n]

    h1c = lin1(hc, params["w1c"], params["b1c"])     # [n_cell, F] bf16
    h1n = lin1(hn, params["w1n"], params["b1n"])     # [n_net,  F] bf16
    h1_stack = jnp.concatenate(
        [_pad2(h1c, nc_s, F), _pad2(h1n, nn_s, F)], axis=0)   # [nc_s + nn_s, F]

    # per-relation degree scaling vectors (A itself stays exact 0/1 -> int8 in HBM)
    din_cc, dout_cc = _deg_scales(adjs["cc"])
    din_cn, dout_cn = _deg_scales(adjs["cn"])
    din_nc, dout_nc = _deg_scales(adjs["nc"])
    din_nn, dout_nn = _deg_scales(adjs["nn"])

    # ---- stage 2: conv (sum over relations) + lin2 + residual, per dst type ----
    def conv_lin2(dst_n, a_from_cell, a_from_net,
                  dout_cell, dout_net, din_cell, din_net,
                  w_cell, b_cell, w_net, b_net, w2, b2, h_res):
        td = min(tile_d, _round_up(dst_n, 32))       # multiple of 32: int8-native sublanes
        assert td % 32 == 0
        dst_pad = _round_up(dst_n, td)

        # adjacency as int8 (0/1 exact): halves the dominant HBM stream
        a_stack = jnp.concatenate(
            [_pad2(a_from_cell, dst_pad, nc_s),
             _pad2(a_from_net, dst_pad, nn_s)], axis=1).astype(jnp.int8)
        # fold deg_out^-1/2 into h1 once per dst type (replaces per-step VPU rescaling)
        dout_vec = jnp.concatenate(
            [_pad1(dout_cell, nc_s, 1.0), _pad1(dout_net, nn_s, 1.0)])[:, None]
        h1s = (h1_stack * dout_vec.astype(f32)).astype(bf16)
        din_c = _pad1(din_cell, dst_pad, 1.0)[:, None].astype(f32)
        din_n = _pad1(din_net, dst_pad, 1.0)[:, None].astype(f32)
        w_cat = jnp.concatenate(
            [_pad2(w_cell, F, G), _pad2(w_net, F, G)], axis=0).astype(bf16)
        b_conv = _pad2(b_cell + b_net, 1, G).astype(f32)   # pre-folded relation biases
        w2_p = _pad2(w2, G, F).astype(bf16)
        b2_p = _pad2(b2, 1, F).astype(f32)
        h_res_p = _pad2(h_res.astype(f32), dst_pad, F)

        out = _conv_call(a_stack, h1s, din_c, din_n,
                         w_cat, b_conv, w2_p, b2_p, h_res_p,
                         td, tile_s, F, G, n_src_cell_tiles)
        return out[:dst_n, :dim]

    out_c = conv_lin2(n_cell, adjs["cc"], adjs["nc"],
                      dout_cc, dout_nc, din_cc, din_nc,
                      params["wcc"], params["bcc"], params["wnc"], params["bnc"],
                      params["w2c"], params["b2c"], hc)
    out_n = conv_lin2(n_net, adjs["cn"], adjs["nn"],
                      dout_cn, dout_nn, din_cn, din_nn,
                      params["wcn"], params["bcn"], params["wnn"], params["bnn"],
                      params["w2n"], params["b2n"], hn)
    return {"Gcell": out_c, "Gnet": out_n}


# pure-JAX f32 reference (same math, no Pallas) for a correctness spot-check
def _normalize_adj(a):
    deg_out = jnp.maximum(jnp.sum(a, axis=0), 1.0)
    deg_in = jnp.maximum(jnp.sum(a, axis=1), 1.0)
    return a * jax.lax.rsqrt(deg_in)[:, None] * jax.lax.rsqrt(deg_out)[None, :]


def rgcn_reference(h, adjs, p):
    hc, hn = h["Gcell"], h["Gnet"]
    a_cc, a_cn = _normalize_adj(adjs["cc"]), _normalize_adj(adjs["cn"])
    a_nc, a_nn = _normalize_adj(adjs["nc"]), _normalize_adj(adjs["nn"])
    h1c = _gelu(hc @ p["w1c"] + p["b1c"])
    h1n = _gelu(hn @ p["w1n"] + p["b1n"])
    gc = _gelu((a_cc @ h1c) @ p["wcc"] + p["bcc"] + (a_nc @ h1n) @ p["wnc"] + p["bnc"])
    gn = _gelu((a_cn @ h1c) @ p["wcn"] + p["bcn"] + (a_nn @ h1n) @ p["wnn"] + p["bnn"])
    h2c = _gelu(gc @ p["w2c"] + p["b2c"])
    h2n = _gelu(gn @ p["w2n"] + p["b2n"])
    return {"Gcell": hc + h2c, "Gnet": hn + h2n}


# ---------------------------------------------------------------------------
# main
# ---------------------------------------------------------------------------
if __name__ == "__main__":
    dim = 32
    n_cell, n_net = 300, 200

    key = jax.random.PRNGKey(0)
    keys = jax.random.split(key, 32)
    ki = iter(keys)

    def lin_init(k, fan_in, fan_out):
        return (jax.random.normal(k, (fan_in, fan_out), jnp.float32)
                * (1.0 / math.sqrt(fan_in)))

    params = {
        # lin1: HeteroLinear {'Gcell': dim, 'Gnet': dim} -> dim
        "w1c": lin_init(next(ki), dim, dim), "b1c": jnp.zeros((1, dim), jnp.float32),
        "w1n": lin_init(next(ki), dim, dim), "b1n": jnp.zeros((1, dim), jnp.float32),
        # conv1: GraphConv(dim, 2*dim) per relation
        "wcc": lin_init(next(ki), dim, 2 * dim), "bcc": jnp.zeros((1, 2 * dim), jnp.float32),
        "wcn": lin_init(next(ki), dim, 2 * dim), "bcn": jnp.zeros((1, 2 * dim), jnp.float32),
        "wnc": lin_init(next(ki), dim, 2 * dim), "bnc": jnp.zeros((1, 2 * dim), jnp.float32),
        "wnn": lin_init(next(ki), dim, 2 * dim), "bnn": jnp.zeros((1, 2 * dim), jnp.float32),
        # lin2: HeteroLinear {'Gcell': 2*dim, 'Gnet': 2*dim} -> dim
        "w2c": lin_init(next(ki), 2 * dim, dim), "b2c": jnp.zeros((1, dim), jnp.float32),
        "w2n": lin_init(next(ki), 2 * dim, dim), "b2n": jnp.zeros((1, dim), jnp.float32),
    }

    # node features
    h = {
        "Gcell": jax.random.normal(next(ki), (n_cell, dim), jnp.float32),
        "Gnet": jax.random.normal(next(ki), (n_net, dim), jnp.float32),
    }

    # synthetic heterograph: dense 0/1 adjacencies [n_dst, n_src] per relation
    adjs = {
        "cc": jax.random.bernoulli(next(ki), 0.3, (n_cell, n_cell)).astype(jnp.float32),
        "cn": jax.random.bernoulli(next(ki), 0.3, (n_net, n_cell)).astype(jnp.float32),
        "nc": jax.random.bernoulli(next(ki), 0.3, (n_cell, n_net)).astype(jnp.float32),
        "nn": jax.random.bernoulli(next(ki), 0.3, (n_net, n_net)).astype(jnp.float32),
    }

    # small tiles so the toy graph exercises a multi-step dst x src grid (incl. the
    # 3-deep buffered reduction path); at real graph sizes use the defaults
    # (tile_d=1024, tile_s=2048).
    out = rgcn_forward(h, adjs, params, tile_d=64, tile_s=128)
    jax.block_until_ready(out)

    ref = rgcn_reference(h, adjs, params)
    for name in ("Gcell", "Gnet"):
        assert out[name].shape == h[name].shape
        err = float(jnp.max(jnp.abs(out[name] - ref[name])))
        assert jnp.allclose(out[name], ref[name], atol=5e-2, rtol=5e-2), (name, err)

    print("KERNEL_OK")
</pallas_src>

<mosaic_0001>
module attributes {stable_mosaic.version = 11 : i64} {
  func.func @_lin1_kernel(%arg0: i32, %arg1: memref<304x128xbf16, #tpu.memory_space<vmem>>, %arg2: memref<128x128xbf16, #tpu.memory_space<vmem>>, %arg3: memref<1x128xf32, #tpu.memory_space<vmem>>, %arg4: memref<304x128xbf16, #tpu.memory_space<vmem>>) attributes {dimension_semantics = [#tpu.dimension_semantics<parallel>], iteration_bounds = array<i64: 1>, scalar_prefetch = 0 : i64, scratch_operands = 0 : i64, tpu.core_type = #tpu.core_type<tc>, window_params = [{transform_indices = @transform_0, window_bounds = array<i64: 304, 128>}, {pipeline_mode = #tpu.pipeline_mode<synchronous>, transform_indices = @transform_1, window_bounds = array<i64: 128, 128>}, {pipeline_mode = #tpu.pipeline_mode<synchronous>, transform_indices = @transform_2, window_bounds = array<i64: 1, 128>}, {transform_indices = @transform_3, window_bounds = array<i64: 304, 128>}]} {
    %c0 = arith.constant 0 : index
    %c0_0 = arith.constant 0 : index
    %0 = vector.load %arg1[%c0, %c0_0] : memref<304x128xbf16, #tpu.memory_space<vmem>>, vector<304x128xbf16>
    %c0_1 = arith.constant 0 : index
    %c0_2 = arith.constant 0 : index
    %1 = vector.load %arg2[%c0_1, %c0_2] : memref<128x128xbf16, #tpu.memory_space<vmem>>, vector<128x128xbf16>
    %cst = arith.constant dense<0.000000e+00> : vector<304x128xf32>
    %2 = tpu.matmul %0, %1, %cst {dimension_numbers = #tpu.dot_dimension_numbers<[1], [0], [0], [1], [0, 0, 1, 1], [], []>} : vector<304x128xbf16>, vector<128x128xbf16>, vector<304x128xf32> -> vector<304x128xf32>
    %c0_3 = arith.constant 0 : index
    %c0_4 = arith.constant 0 : index
    %3 = vector.load %arg3[%c0_3, %c0_4] : memref<1x128xf32, #tpu.memory_space<vmem>>, vector<1x128xf32>
    %4 = vector.broadcast %3 : vector<1x128xf32> to vector<304x128xf32>
    %5 = arith.addf %2, %4 : vector<304x128xf32>
    %cst_5 = arith.constant 5.000000e-01 : f32
    %6 = vector.broadcast %cst_5 : f32 to vector<304x128xf32>
    %7 = arith.mulf %6, %5 : vector<304x128xf32>
    %cst_6 = arith.constant 0.707106769 : f32
    %8 = vector.broadcast %cst_6 : f32 to vector<304x128xf32>
    %9 = arith.mulf %5, %8 : vector<304x128xf32>
    %10 = math.erf %9 : vector<304x128xf32>
    %cst_7 = arith.constant 1.000000e+00 : f32
    %11 = vector.broadcast %cst_7 : f32 to vector<304x128xf32>
    %12 = arith.addf %11, %10 : vector<304x128xf32>
    %13 = arith.mulf %7, %12 : vector<304x128xf32>
    %14 = arith.truncf %13 : vector<304x128xf32> to vector<304x128xbf16>
    %c0_8 = arith.constant 0 : index
    %c0_9 = arith.constant 0 : index
    %15 = vector.load %arg4[%c0_8, %c0_9] : memref<304x128xbf16, #tpu.memory_space<vmem>>, vector<304x128xbf16>
    tpu.vector_store %arg4[%c0_8, %c0_9], %14 {strides = array<i32>} : memref<304x128xbf16, #tpu.memory_space<vmem>>, vector<304x128xbf16>,
    return
  }
  func.func @transform_0(%arg0: i32) -> (i32, i32) {
    %c0_i32 = arith.constant 0 : i32
    %c0_i32_0 = arith.constant 0 : i32
    return %arg0, %c0_i32 : i32, i32
  }
  func.func @transform_1(%arg0: i32) -> (i32, i32) {
    %c0_i32 = arith.constant 0 : i32
    %c0_i32_0 = arith.constant 0 : i32
    %c0_i32_1 = arith.constant 0 : i32
    return %c0_i32, %c0_i32_0 : i32, i32
  }
  func.func @transform_2(%arg0: i32) -> (i32, i32) {
    %c0_i32 = arith.constant 0 : i32
    %c0_i32_0 = arith.constant 0 : i32
    %c0_i32_1 = arith.constant 0 : i32
    return %c0_i32, %c0_i32_0 : i32, i32
  }
  func.func @transform_3(%arg0: i32) -> (i32, i32) {
    %c0_i32 = arith.constant 0 : i32
    %c0_i32_0 = arith.constant 0 : i32
    return %arg0, %c0_i32 : i32, i32
  }
}

</mosaic_0001>

<llo_original>
// kernel: tpu_custom_call.1
$region0: #{tpu_custom_call.1}
  #allocation0 [shape = 'u32[]', space=smem, size = 0x4, offset = 0x4, fixed_abs, tag = 'smem constant byte address 0x4 - core index']
  #allocation1 [shape = 'u32[144,128]{1,0:T(1,128)}', space=vmem, size = 0x12000, scoped, tag = 'internal scratch']
  %s0 = inlined_call_operand.hbm [shape: bf16[304,128], index: 0, kind: input, shape index: {}]
  %s1 = inlined_call_operand.hbm [shape: bf16[128,128], index: 1, kind: input, shape index: {}]
  %s2 = inlined_call_operand.vmem [shape: f32[1,128], index: 2, kind: input, shape index: {}]
  %s3 = inlined_call_operand.hbm [shape: bf16[304,128], index: 3, kind: output, shape index: {}]
  %s4 = sld [smem:[#allocation0]]
  $region30: #{tpu_custom_call.1} parent=0
    _
  %s6 = ssub.s32 1, %s4
  %s7 = scalar_select 0, %s6, %s4
  $region1: #{tpu_custom_call.1} parent=0
    #allocation2 [shape = 'u8[77824]{0}', space=vmem, size = 0x13000, scoped, tag = 'input window, operand 0, single buffered']
    #allocation3 [shape = 's32[1]{0}', space=sflag, size = 0x4, scoped, tag = 'scoped memory for tpu_custom_call.1']
    #allocation4 [shape = 's32[1]{0}', space=sflag, size = 0x4, scoped, tag = 'scoped memory for tpu_custom_call.1']
    #allocation5 [shape = 'u8[32768]{0}', space=vmem, size = 0x8000, scoped, tag = 'input window, operand 1, single buffered']
    #allocation6 [shape = 's32[1]{0}', space=sflag, size = 0x4, scoped, tag = 'scoped memory for tpu_custom_call.1']
    #allocation7 [shape = 'u8[77824]{0}', space=vmem, size = 0x13000, scoped, tag = 'output window, operand 0, single buffered']
    %8 = vsyncpa [#allocation3], 0
    %9 = vsyncpa [#allocation6], 0
    %10 = vsyncpa [#allocation4], 0
    // Predicated region
    $region2: #{tpu_custom_call.1} parent=1 // pred_check
      _
    $region3: #{tpu_custom_call.1} parent=1 // pred_check_branch
      %12 = sbr.rel (0) target = $region5
    $region4: #{tpu_custom_call.1} parent=1 // pred_region
      %s14 = ssub.s32 2432, 2432
      %15 = vsyncadd [#allocation3], %s14
      %s16 = sshll.u32 [#allocation2], 4
      %s17 = int_to_ptr.vmem [resolvable:$true] %s16
      %22 = dma.hbm_to_vmem [thread:$0]  %s0, 2432, %s17, [#allocation3], 64, 64, 4
    $region5: #{tpu_custom_call.1} parent=1 // pred_fallthru
      _
    // Predicated region
    $region6: #{tpu_custom_call.1} parent=1 // pred_check
      _
    $region7: #{tpu_custom_call.1} parent=1 // pred_check_branch
      %24 = sbr.rel (0) target = $region9
    $region8: #{tpu_custom_call.1} parent=1 // pred_region
      %s26 = ssub.s32 1024, 1024
      %27 = vsyncadd [#allocation6], %s26
      %s28 = sshll.u32 [#allocation5], 4
      %s29 = int_to_ptr.vmem [resolvable:$true] %s28
      %34 = dma.hbm_to_vmem [thread:$0]  %s1, 1024, %s29, [#allocation6], 64, 64, 4
    $region9: #{tpu_custom_call.1} parent=1 // pred_fallthru
      _
    // Predicated region
    $region10: #{tpu_custom_call.1} parent=1 // pred_check
      _
    $region11: #{tpu_custom_call.1} parent=1 // pred_check_branch
      %36 = sbr.rel (0) target = $region13
    $region12: #{tpu_custom_call.1} parent=1 // pred_region
      _
    $region13: #{tpu_custom_call.1} parent=1 // pred_fallthru
      _
    // Predicated region
    $region14: #{tpu_custom_call.1} parent=1 // pred_check
      _
    $region15: #{tpu_custom_call.1} parent=1 // pred_check_branch
      %38 = sbr.rel (0) target = $region17
    $region16: #{tpu_custom_call.1} parent=1 // pred_region
      %39 = dma.done [#allocation3], 2432
    $region17: #{tpu_custom_call.1} parent=1 // pred_fallthru
      _
    // Predicated region
    $region18: #{tpu_custom_call.1} parent=1 // pred_check
      _
    $region19: #{tpu_custom_call.1} parent=1 // pred_check_branch
      %41 = sbr.rel (0) target = $region21
    $region20: #{tpu_custom_call.1} parent=1 // pred_region
      %42 = dma.done [#allocation6], 1024
    $region21: #{tpu_custom_call.1} parent=1 // pred_fallthru
      _
    %v44 = vld [vmem:[#allocation2] sm:$0xf]
    %v45 = vld [vmem:[#allocation2 + $0x4] sm:$0xf]
    %v46 = vld [vmem:[#allocation2 + $0x8] sm:$0xf]
    %v47 = vld [vmem:[#allocation2 + $0xc] sm:$0xf]
    %v48 = vld [vmem:[#allocation2 + $0x10] sm:$0xf]
    %v49 = vld [vmem:[#allocation2 + $0x14] sm:$0xf]
    %v50 = vld [vmem:[#allocation2 + $0x18] sm:$0xf]
    %v51 = vld [vmem:[#allocation2 + $0x1c] sm:$0xf]
    %v52 = vld [vmem:[#allocation2 + $0x20] sm:$0xf]
    %v53 = vld [vmem:[#allocation2 + $0x24] sm:$0xf]
    %v54 = vld [vmem:[#allocation2 + $0x28] sm:$0xf]
    %v55 = vld [vmem:[#allocation2 + $0x2c] sm:$0xf]
    %v56 = vld [vmem:[#allocation2 + $0x30] sm:$0xf]
    %v57 = vld [vmem:[#allocation2 + $0x34] sm:$0xf]
    %v58 = vld [vmem:[#allocation2 + $0x38] sm:$0xf]
    %v59 = vld [vmem:[#allocation2 + $0x3c] sm:$0xf]
    %v60 = vld [vmem:[#allocation2 + $0x40] sm:$0xf]
    %v61 = vld [vmem:[#allocation2 + $0x44] sm:$0xf]
    %v62 = vld [vmem:[#allocation2 + $0x48] sm:$0xf]
    %v63 = vld [vmem:[#allocation2 + $0x4c] sm:$0xf]
    %v64 = vld [vmem:[#allocation2 + $0x50] sm:$0xf]
    %v65 = vld [vmem:[#allocation2 + $0x54] sm:$0xf]
    %v66 = vld [vmem:[#allocation2 + $0x58] sm:$0xf]
    %v67 = vld [vmem:[#allocation2 + $0x5c] sm:$0xf]
    %v68 = vld [vmem:[#allocation2 + $0x60] sm:$0xf]
    %v69 = vld [vmem:[#allocation2 + $0x64] sm:$0xf]
    %v70 = vld [vmem:[#allocation2 + $0x68] sm:$0xf]
    %v71 = vld [vmem:[#allocation2 + $0x6c] sm:$0xf]
    %v72 = vld [vmem:[#allocation2 + $0x70] sm:$0xf]
    %v73 = vld [vmem:[#allocation2 + $0x74] sm:$0xf]
    %v74 = vld [vmem:[#allocation2 + $0x78] sm:$0xf]
    %v75 = vld [vmem:[#allocation2 + $0x7c] sm:$0xf]
    %v76 = vld [vmem:[#allocation2 + $0x80] sm:$0xf]
    %v77 = vld [vmem:[#allocation2 + $0x84] sm:$0xf]
    %v78 = vld [vmem:[#allocation2 + $0x88] sm:$0xf]
    %v79 = vld [vmem:[#allocation2 + $0x8c] sm:$0xf]
    %v80 = vld [vmem:[#allocation2 + $0x90] sm:$0xf]
    %v81 = vld [vmem:[#allocation2 + $0x94] sm:$0xf]
    %v82 = vld [vmem:[#allocation5] sm:$0xf]
    %v83 = vld [vmem:[#allocation5 + $0x4] sm:$0xf]
    %v84 = vld [vmem:[#allocation5 + $0x8] sm:$0xf]
    %v85 = vld [vmem:[#allocation5 + $0xc] sm:$0xf]
    %v86 = vld [vmem:[#allocation5 + $0x10] sm:$0xf]
    %v87 = vld [vmem:[#allocation5 + $0x14] sm:$0xf]
    %v88 = vld [vmem:[#allocation5 + $0x18] sm:$0xf]
    %v89 = vld [vmem:[#allocation5 + $0x1c] sm:$0xf]
    %v90 = vld [vmem:[#allocation5 + $0x20] sm:$0xf]
    %v91 = vld [vmem:[#allocation5 + $0x24] sm:$0xf]
    %v92 = vld [vmem:[#allocation5 + $0x28] sm:$0xf]
    %v93 = vld [vmem:[#allocation5 + $0x2c] sm:$0xf]
    %v94 = vld [vmem:[#allocation5 + $0x30] sm:$0xf]
    %v95 = vld [vmem:[#allocation5 + $0x34] sm:$0xf]
    %v96 = vld [vmem:[#allocation5 + $0x38] sm:$0xf]
    %v97 = vld [vmem:[#allocation5 + $0x3c] sm:$0xf]
    %v98 = vld [vmem:[%s2] sm:$0x1]
    %v100 = vlaneseq
    %v101 = vshrl.u32 %v100, 7
    %v102 = vsub.s32 0, %v101
    %v103 = vrot.slane %v98, %v102
    %v143 = vunpack.c.l.b16 %v44
    %v144 = vunpack.c.l.b16 %v45
    %v145 = vunpack.c.l.b16 %v46
    %v146 = vunpack.c.l.b16 %v47
    %v147 = vunpack.c.l.b16 %v48
    %v148 = vunpack.c.l.b16 %v49
    %v149 = vunpack.c.l.b16 %v50
    %v150 = vunpack.c.l.b16 %v51
    %v151 = vunpack.c.l.b16 %v52
    %v152 = vunpack.c.l.b16 %v53
    %v153 = vunpack.c.l.b16 %v54
    %v154 = vunpack.c.l.b16 %v55
    %v155 = vunpack.c.l.b16 %v56
    %v156 = vunpack.c.l.b16 %v57
    %v157 = vunpack.c.l.b16 %v58
    %v158 = vunpack.c.l.b16 %v59
    %v159 = vunpack.c.l.b16 %v60
    %v160 = vunpack.c.l.b16 %v61
    %v161 = vunpack.c.l.b16 %v62
    %v162 = vunpack.c.l.b16 %v63
    %v163 = vunpack.c.l.b16 %v64
    %v164 = vunpack.c.l.b16 %v65
    %v165 = vunpack.c.l.b16 %v66
    %v166 = vunpack.c.l.b16 %v67
    %v167 = vunpack.c.l.b16 %v68
    %v168 = vunpack.c.l.b16 %v69
    %v169 = vunpack.c.l.b16 %v70
    %v170 = vunpack.c.l.b16 %v71
    %v171 = vunpack.c.l.b16 %v72
    %v172 = vunpack.c.l.b16 %v73
    %v173 = vunpack.c.l.b16 %v74
    %v174 = vunpack.c.l.b16 %v75
    %v175 = vunpack.c.l.b16 %v76
    %v176 = vunpack.c.l.b16 %v77
    %v177 = vunpack.c.l.b16 %v78
    %v178 = vunpack.c.l.b16 %v79
    %v179 = vunpack.c.l.b16 %v80
    %v180 = vunpack.c.l.b16 %v81
    %v181 = vpack.c.b16 %v144, %v143
    %v182 = vpack.c.b16 %v146, %v145
    %v183 = vpack.c.b16 %v148, %v147
    %v184 = vpack.c.b16 %v150, %v149
    %v185 = vpack.c.b16 %v152, %v151
    %v186 = vpack.c.b16 %v154, %v153
    %v187 = vpack.c.b16 %v156, %v155
    %v188 = vpack.c.b16 %v158, %v157
    %v189 = vpack.c.b16 %v160, %v159
    %v190 = vpack.c.b16 %v162, %v161
    %v191 = vpack.c.b16 %v164, %v163
    %v192 = vpack.c.b16 %v166, %v165
    %v193 = vpack.c.b16 %v168, %v167
    %v194 = vpack.c.b16 %v170, %v169
    %v195 = vpack.c.b16 %v172, %v171
    %v196 = vpack.c.b16 %v174, %v173
    %v197 = vpack.c.b16 %v176, %v175
    %v198 = vpack.c.b16 %v178, %v177
    %v199 = vpack.c.b16 %v180, %v179
    %v235 = vunpack.c.l.b16 %v82
    %v236 = vunpack.c.l.b16 %v83
    %v237 = vunpack.c.l.b16 %v84
    %v238 = vunpack.c.l.b16 %v85
    %v239 = vunpack.c.l.b16 %v86
    %v240 = vunpack.c.l.b16 %v87
    %v241 = vunpack.c.l.b16 %v88
    %v242 = vunpack.c.l.b16 %v89
    %v243 = vunpack.c.l.b16 %v90
    %v244 = vunpack.c.l.b16 %v91
    %v245 = vunpack.c.l.b16 %v92
    %v246 = vunpack.c.l.b16 %v93
    %v247 = vunpack.c.l.b16 %v94
    %v248 = vunpack.c.l.b16 %v95
    %v249 = vunpack.c.l.b16 %v96
    %v250 = vunpack.c.l.b16 %v97
    %v251 = vpack.c.b16 %v236, %v235
    %v252 = vpack.c.b16 %v238, %v237
    %v253 = vpack.c.b16 %v240, %v239
    %v254 = vpack.c.b16 %v242, %v241
    %v255 = vpack.c.b16 %v244, %v243
    %v256 = vpack.c.b16 %v246, %v245
    %v257 = vpack.c.b16 %v248, %v247
    %v258 = vpack.c.b16 %v250, %v249
    %267 = vmatprep.subr.bf16.mxu0 0
    %268 = vmatpush1.bf16.msra.mxu0 %v251
    %269 = vmatprep.subr.bf16.mxu0 0
    %270 = vmatpush1.bf16.msra.mxu0 %v252
    %271 = vmatprep.subr.bf16.mxu0 0
    %272 = vmatpush1.bf16.msra.mxu0 %v253
    %273 = vmatprep.subr.bf16.mxu0 0
    %274 = vmatpush1.bf16.msra.mxu0 %v254
    %275 = vmatprep.subr.bf16.mxu0 0
    %276 = vmatpush1.bf16.msra.mxu0 %v255
    %277 = vmatprep.subr.bf16.mxu0 0
    %278 = vmatpush1.bf16.msra.mxu0 %v256
    %279 = vmatprep.subr.bf16.mxu0 0
    %280 = vmatpush1.bf16.msra.mxu0 %v257
    %281 = vmatprep.subr.bf16.mxu0 0
    %282 = vmatpush1.bf16.msra.mxu0 %v258
    %283 = vmatprep.subr.bf16.mxu0 0
    %284 = vmatpush1.bf16.msra.mxu0 0
    %285 = vmatprep.subr.bf16.mxu0 0
    %286 = vmatpush1.bf16.msra.mxu0 0
    %287 = vmatprep.subr.bf16.mxu0 0
    %288 = vmatpush1.bf16.msra.mxu0 0
    %289 = vmatprep.subr.bf16.mxu0 0
    %290 = vmatpush1.bf16.msra.mxu0 0
    %291 = vmatprep.subr.bf16.mxu0 0
    %292 = vmatpush1.bf16.msra.mxu0 0
    %293 = vmatprep.subr.bf16.mxu0 0
    %294 = vmatpush1.bf16.msra.mxu0 0
    %295 = vmatprep.subr.bf16.mxu0 0
    %296 = vmatpush1.bf16.msra.mxu0 0
    %297 = vmatprep.subr.bf16.mxu0 0
    %298 = vmatpush1.bf16.msra.mxu0 0
    %299 = vmatprep.mubr.bf16.mxu0 0
    %300 = vmatmul.mubr.bf16.gmra.mrb[0].mxu0 %v181
    %v301 = vpop.f32.mrb[0].mxu0
    %v302 = vadd.f32 %v103, %v301
    %v303 = vpop.f32.mrb[0].mxu0
    %v304 = vpop.f32.mrb[0].mxu0
    %v305 = vadd.f32 %v103, %v304
    %v306 = vpop.f32.mrb[0].mxu0
    %307 = vmatprep.mubr.bf16.mxu0 0
    %308 = vmatmul.mubr.bf16.gmra.mrb[0].mxu0 %v182
    %v309 = vpop.f32.mrb[0].mxu0
    %v310 = vadd.f32 %v103, %v309
    %v311 = vpop.f32.mrb[0].mxu0
    %v312 = vpop.f32.mrb[0].mxu0
    %v313 = vadd.f32 %v103, %v312
    %v314 = vpop.f32.mrb[0].mxu0
    %315 = vmatprep.mubr.bf16.mxu0 0
    %316 = vmatmul.mubr.bf16.gmra.mrb[0].mxu0 %v183
    %v317 = vpop.f32.mrb[0].mxu0
    %v318 = vadd.f32 %v103, %v317
    %v319 = vpop.f32.mrb[0].mxu0
    %v320 = vpop.f32.mrb[0].mxu0
    %v321 = vadd.f32 %v103, %v320
    %v322 = vpop.f32.mrb[0].mxu0
    %323 = vmatprep.mubr.bf16.mxu0 0
    %324 = vmatmul.mubr.bf16.gmra.mrb[0].mxu0 %v184
    %v325 = vpop.f32.mrb[0].mxu0
    %v326 = vadd.f32 %v103, %v325
    %v327 = vpop.f32.mrb[0].mxu0
    %v328 = vpop.f32.mrb[0].mxu0
    %v329 = vadd.f32 %v103, %v328
    %v330 = vpop.f32.mrb[0].mxu0
    %331 = vmatprep.mubr.bf16.mxu0 0
    %332 = vmatmul.mubr.bf16.gmra.mrb[0].mxu0 %v185
    %v333 = vpop.f32.mrb[0].mxu0
    %v334 = vadd.f32 %v103, %v333
    %v335 = vpop.f32.mrb[0].mxu0
    %v336 = vpop.f32.mrb[0].mxu0
    %v337 = vadd.f32 %v103, %v336
    %v338 = vpop.f32.mrb[0].mxu0
    %339 = vmatprep.mubr.bf16.mxu0 0
    %340 = vmatmul.mubr.bf16.gmra.mrb[0].mxu0 %v186
    %v341 = vpop.f32.mrb[0].mxu0
    %v342 = vadd.f32 %v103, %v341
    %v343 = vpop.f32.mrb[0].mxu0
    %v344 = vpop.f32.mrb[0].mxu0
    %v345 = vadd.f32 %v103, %v344
    %v346 = vpop.f32.mrb[0].mxu0
    %347 = vmatprep.mubr.bf16.mxu0 0
    %348 = vmatmul.mubr.bf16.gmra.mrb[0].mxu0 %v187
    %v349 = vpop.f32.mrb[0].mxu0
    %v350 = vadd.f32 %v103, %v349
    %v351 = vpop.f32.mrb[0].mxu0
    %v352 = vpop.f32.mrb[0].mxu0
    %v353 = vadd.f32 %v103, %v352
    %v354 = vpop.f32.mrb[0].mxu0
    %355 = vmatprep.mubr.bf16.mxu0 0
    %356 = vmatmul.mubr.bf16.gmra.mrb[0].mxu0 %v188
    %v357 = vpop.f32.mrb[0].mxu0
    %v358 = vadd.f32 %v103, %v357
    %v359 = vpop.f32.mrb[0].mxu0
    %v360 = vpop.f32.mrb[0].mxu0
    %v361 = vadd.f32 %v103, %v360
    %v362 = vpop.f32.mrb[0].mxu0
    %363 = vmatprep.mubr.bf16.mxu0 0
    %364 = vmatmul.mubr.bf16.gmra.mrb[0].mxu0 %v189
    %v365 = vpop.f32.mrb[0].mxu0
    %v366 = vadd.f32 %v103, %v365
    %v367 = vpop.f32.mrb[0].mxu0
    %v368 = vpop.f32.mrb[0].mxu0
    %v369 = vadd.f32 %v103, %v368
    %v370 = vpop.f32.mrb[0].mxu0
    %371 = vmatprep.mubr.bf16.mxu0 0
    %372 = vmatmul.mubr.bf16.gmra.mrb[0].mxu0 %v190
    %v373 = vpop.f32.mrb[0].mxu0
    %v374 = vadd.f32 %v103, %v373
    %v375 = vpop.f32.mrb[0].mxu0
    %v376 = vpop.f32.mrb[0].mxu0
    %v377 = vadd.f32 %v103, %v376
    %v378 = vpop.f32.mrb[0].mxu0
    %379 = vmatprep.mubr.bf16.mxu0 0
    %380 = vmatmul.mubr.bf16.gmra.mrb[0].mxu0 %v191
    %v381 = vpop.f32.mrb[0].mxu0
    %v382 = vadd.f32 %v103, %v381
    %v383 = vpop.f32.mrb[0].mxu0
    %v384 = vpop.f32.mrb[0].mxu0
    %v385 = vadd.f32 %v103, %v384
    %v386 = vpop.f32.mrb[0].mxu0
    %387 = vmatprep.mubr.bf16.mxu0 0
    %388 = vmatmul.mubr.bf16.gmra.mrb[0].mxu0 %v192
    %v389 = vpop.f32.mrb[0].mxu0
    %v390 = vadd.f32 %v103, %v389
    %v391 = vpop.f32.mrb[0].mxu0
    %v392 = vpop.f32.mrb[0].mxu0
    %v393 = vadd.f32 %v103, %v392
    %v394 = vpop.f32.mrb[0].mxu0
    %395 = vmatprep.mubr.bf16.mxu0 0
    %396 = vmatmul.mubr.bf16.gmra.mrb[0].mxu0 %v193
    %v397 = vpop.f32.mrb[0].mxu0
    %v398 = vadd.f32 %v103, %v397
    %v399 = vpop.f32.mrb[0].mxu0
    %v400 = vpop.f32.mrb[0].mxu0
    %v401 = vadd.f32 %v103, %v400
    %v402 = vpop.f32.mrb[0].mxu0
    %403 = vmatprep.mubr.bf16.mxu0 0
    %404 = vmatmul.mubr.bf16.gmra.mrb[0].mxu0 %v194
    %v405 = vpop.f32.mrb[0].mxu0
    %v406 = vadd.f32 %v103, %v405
    %v407 = vpop.f32.mrb[0].mxu0
    %v408 = vpop.f32.mrb[0].mxu0
    %v409 = vadd.f32 %v103, %v408
    %v410 = vpop.f32.mrb[0].mxu0
    %411 = vmatprep.mubr.bf16.mxu0 0
    %412 = vmatmul.mubr.bf16.gmra.mrb[0].mxu0 %v195
    %v413 = vpop.f32.mrb[0].mxu0
    %v414 = vadd.f32 %v103, %v413
    %v415 = vpop.f32.mrb[0].mxu0
    %v416 = vpop.f32.mrb[0].mxu0
    %v417 = vadd.f32 %v103, %v416
    %v418 = vpop.f32.mrb[0].mxu0
    %419 = vmatprep.mubr.bf16.mxu0 0
    %420 = vmatmul.mubr.bf16.gmra.mrb[0].mxu0 %v196
    %v421 = vpop.f32.mrb[0].mxu0
    %v422 = vadd.f32 %v103, %v421
    %v423 = vpop.f32.mrb[0].mxu0
    %v424 = vpop.f32.mrb[0].mxu0
    %v425 = vadd.f32 %v103, %v424
    %v426 = vpop.f32.mrb[0].mxu0
    %427 = vmatprep.mubr.bf16.mxu0 0
    %428 = vmatmul.mubr.bf16.gmra.mrb[0].mxu0 %v197
    %v429 = vpop.f32.mrb[0].mxu0
    %v430 = vadd.f32 %v103, %v429
    %v431 = vpop.f32.mrb[0].mxu0
    %v432 = vpop.f32.mrb[0].mxu0
    %v433 = vadd.f32 %v103, %v432
    %v434 = vpop.f32.mrb[0].mxu0
    %435 = vmatprep.mubr.bf16.mxu0 0
    %436 = vmatmul.mubr.bf16.gmra.mrb[0].mxu0 %v198
    %v437 = vpop.f32.mrb[0].mxu0
    %v438 = vadd.f32 %v103, %v437
    %v439 = vpop.f32.mrb[0].mxu0
    %v440 = vpop.f32.mrb[0].mxu0
    %v441 = vadd.f32 %v103, %v440
    %v442 = vpop.f32.mrb[0].mxu0
    %443 = vmatprep.mubr.bf16.mxu0 0
    %444 = vmatmul.mubr.bf16.gmra.mrb[0].mxu0 %v199
    %v445 = vpop.f32.mrb[0].mxu0
    %v446 = vadd.f32 %v103, %v445
    %v447 = vpop.f32.mrb[0].mxu0
    %v448 = vpop.f32.mrb[0].mxu0
    %v449 = vadd.f32 %v103, %v448
    %v450 = vpop.f32.mrb[0].mxu0
    %451 = vdwg.mxu0
    %v452 = vmul.f32 %v302, 0.5
    %v453 = vmul.f32 %v305, 0.5
    %v454 = vmul.f32 %v310, 0.5
    %v455 = vmul.f32 %v313, 0.5
    %v456 = vmul.f32 %v318, 0.5
    %v457 = vmul.f32 %v321, 0.5
    %v458 = vmul.f32 %v326, 0.5
    %v459 = vmul.f32 %v329, 0.5
    %v460 = vmul.f32 %v334, 0.5
    %v461 = vmul.f32 %v337, 0.5
    %v462 = vmul.f32 %v342, 0.5
    %v463 = vmul.f32 %v345, 0.5
    %v464 = vmul.f32 %v350, 0.5
    %v465 = vmul.f32 %v353, 0.5
    %v466 = vmul.f32 %v358, 0.5
    %v467 = vmul.f32 %v361, 0.5
    %v468 = vmul.f32 %v366, 0.5
    %v469 = vmul.f32 %v369, 0.5
    %v470 = vmul.f32 %v374, 0.5
    %v471 = vmul.f32 %v377, 0.5
    %v472 = vmul.f32 %v382, 0.5
    %v473 = vmul.f32 %v385, 0.5
    %v474 = vmul.f32 %v390, 0.5
    %v475 = vmul.f32 %v393, 0.5
    %v476 = vmul.f32 %v398, 0.5
    %v477 = vmul.f32 %v401, 0.5
    %v478 = vmul.f32 %v406, 0.5
    %v479 = vmul.f32 %v409, 0.5
    %v480 = vmul.f32 %v414, 0.5
    %v481 = vmul.f32 %v417, 0.5
    %v482 = vmul.f32 %v422, 0.5
    %v483 = vmul.f32 %v425, 0.5
    %v484 = vmul.f32 %v430, 0.5
    %v485 = vmul.f32 %v433, 0.5
    %v486 = vmul.f32 %v438, 0.5
    %v487 = vmul.f32 %v441, 0.5
    %v488 = vmul.f32 %v446, 0.5
    %v489 = vmul.f32 %v449, 0.5
    %v490 = vmul.f32 %v302, 0.70710677
    %v491 = vmul.f32 %v305, 0.70710677
    %v492 = vmul.f32 %v310, 0.70710677
    %v493 = vmul.f32 %v313, 0.70710677
    %v494 = vmul.f32 %v318, 0.70710677
    %v495 = vmul.f32 %v321, 0.70710677
    %v496 = vmul.f32 %v326, 0.70710677
    %v497 = vmul.f32 %v329, 0.70710677
    %v498 = vmul.f32 %v334, 0.70710677
    %v499 = vmul.f32 %v337, 0.70710677
    %v500 = vmul.f32 %v342, 0.70710677
    %v501 = vmul.f32 %v345, 0.70710677
    %v502 = vmul.f32 %v350, 0.70710677
    %v503 = vmul.f32 %v353, 0.70710677
    %v504 = vmul.f32 %v358, 0.70710677
    %v505 = vmul.f32 %v361, 0.70710677
    %v506 = vmul.f32 %v366, 0.70710677
    %v507 = vmul.f32 %v369, 0.70710677
    %v508 = vmul.f32 %v374, 0.70710677
    %v509 = vmul.f32 %v377, 0.70710677
    %v510 = vmul.f32 %v382, 0.70710677
    %v511 = vmul.f32 %v385, 0.70710677
    %v512 = vmul.f32 %v390, 0.70710677
    %v513 = vmul.f32 %v393, 0.70710677
    %v514 = vmul.f32 %v398, 0.70710677
    %v515 = vmul.f32 %v401, 0.70710677
    %v516 = vmul.f32 %v406, 0.70710677
    %v517 = vmul.f32 %v409, 0.70710677
    %v518 = vmul.f32 %v414, 0.70710677
    %v519 = vmul.f32 %v417, 0.70710677
    %v520 = vmul.f32 %v422, 0.70710677
    %v521 = vmul.f32 %v425, 0.70710677
    %v522 = vmul.f32 %v430, 0.70710677
    %v523 = vmul.f32 %v433, 0.70710677
    %v524 = vmul.f32 %v438, 0.70710677
    %v525 = vmul.f32 %v441, 0.70710677
    %v526 = vmul.f32 %v446, 0.70710677
    %v527 = vmul.f32 %v449, 0.70710677
    %v528 = verf.f32.pop %v490
    %v529 = verf.f32.pop %v491
    %v530 = verf.f32.pop %v492
    %v531 = verf.f32.pop %v493
    %v532 = verf.f32.pop %v494
    %v533 = verf.f32.pop %v495
    %v534 = verf.f32.pop %v496
    %v535 = verf.f32.pop %v497
    %v536 = verf.f32.pop %v498
    %v537 = verf.f32.pop %v499
    %v538 = verf.f32.pop %v500
    %v539 = verf.f32.pop %v501
    %v540 = verf.f32.pop %v502
    %v541 = verf.f32.pop %v503
    %v542 = verf.f32.pop %v504
    %v543 = verf.f32.pop %v505
    %v544 = verf.f32.pop %v506
    %v545 = verf.f32.pop %v507
    %v546 = verf.f32.pop %v508
    %v547 = verf.f32.pop %v509
    %v548 = verf.f32.pop %v510
    %v549 = verf.f32.pop %v511
    %v550 = verf.f32.pop %v512
    %v551 = verf.f32.pop %v513
    %v552 = verf.f32.pop %v514
    %v553 = verf.f32.pop %v515
    %v554 = verf.f32.pop %v516
    %v555 = verf.f32.pop %v517
    %v556 = verf.f32.pop %v518
    %v557 = verf.f32.pop %v519
    %v558 = verf.f32.pop %v520
    %v559 = verf.f32.pop %v521
    %v560 = verf.f32.pop %v522
    %v561 = verf.f32.pop %v523
    %v562 = verf.f32.pop %v524
    %v563 = verf.f32.pop %v525
    %v564 = verf.f32.pop %v526
    %v565 = verf.f32.pop %v527
    %v566 = vadd.f32 %v528, 1.0
    %v567 = vadd.f32 %v529, 1.0
    %v568 = vadd.f32 %v530, 1.0
    %v569 = vadd.f32 %v531, 1.0
    %v570 = vadd.f32 %v532, 1.0
    %v571 = vadd.f32 %v533, 1.0
    %v572 = vadd.f32 %v534, 1.0
    %v573 = vadd.f32 %v535, 1.0
    %v574 = vadd.f32 %v536, 1.0
    %v575 = vadd.f32 %v537, 1.0
    %v576 = vadd.f32 %v538, 1.0
    %v577 = vadd.f32 %v539, 1.0
    %v578 = vadd.f32 %v540, 1.0
    %v579 = vadd.f32 %v541, 1.0
    %v580 = vadd.f32 %v542, 1.0
    %v581 = vadd.f32 %v543, 1.0
    %v582 = vadd.f32 %v544, 1.0
    %v583 = vadd.f32 %v545, 1.0
    %v584 = vadd.f32 %v546, 1.0
    %v585 = vadd.f32 %v547, 1.0
    %v586 = vadd.f32 %v548, 1.0
    %v587 = vadd.f32 %v549, 1.0
    %v588 = vadd.f32 %v550, 1.0
    %v589 = vadd.f32 %v551, 1.0
    %v590 = vadd.f32 %v552, 1.0
    %v591 = vadd.f32 %v553, 1.0
    %v592 = vadd.f32 %v554, 1.0
    %v593 = vadd.f32 %v555, 1.0
    %v594 = vadd.f32 %v556, 1.0
    %v595 = vadd.f32 %v557, 1.0
    %v596 = vadd.f32 %v558, 1.0
    %v597 = vadd.f32 %v559, 1.0
    %v598 = vadd.f32 %v560, 1.0
    %v599 = vadd.f32 %v561, 1.0
    %v600 = vadd.f32 %v562, 1.0
    %v601 = vadd.f32 %v563, 1.0
    %v602 = vadd.f32 %v564, 1.0
    %v603 = vadd.f32 %v565, 1.0
    %v604 = vmul.f32 %v452, %v566
    %v605 = vmul.f32 %v453, %v567
    %v606 = vmul.f32 %v454, %v568
    %v607 = vmul.f32 %v455, %v569
    %v608 = vmul.f32 %v456, %v570
    %v609 = vmul.f32 %v457, %v571
    %v610 = vmul.f32 %v458, %v572
    %v611 = vmul.f32 %v459, %v573
    %v612 = vmul.f32 %v460, %v574
    %v613 = vmul.f32 %v461, %v575
    %v614 = vmul.f32 %v462, %v576
    %v615 = vmul.f32 %v463, %v577
    %v616 = vmul.f32 %v464, %v578
    %v617 = vmul.f32 %v465, %v579
    %v618 = vmul.f32 %v466, %v580
    %v619 = vmul.f32 %v467, %v581
    %v620 = vmul.f32 %v468, %v582
    %v621 = vmul.f32 %v469, %v583
    %v622 = vmul.f32 %v470, %v584
    %v623 = vmul.f32 %v471, %v585
    %v624 = vmul.f32 %v472, %v586
    %v625 = vmul.f32 %v473, %v587
    %v626 = vmul.f32 %v474, %v588
    %v627 = vmul.f32 %v475, %v589
    %v628 = vmul.f32 %v476, %v590
    %v629 = vmul.f32 %v477, %v591
    %v630 = vmul.f32 %v478, %v592
    %v631 = vmul.f32 %v479, %v593
    %v632 = vmul.f32 %v480, %v594
    %v633 = vmul.f32 %v481, %v595
    %v634 = vmul.f32 %v482, %v596
    %v635 = vmul.f32 %v483, %v597
    %v636 = vmul.f32 %v484, %v598
    %v637 = vmul.f32 %v485, %v599
    %v638 = vmul.f32 %v486, %v600
    %v639 = vmul.f32 %v487, %v601
    %v640 = vmul.f32 %v488, %v602
    %v641 = vmul.f32 %v489, %v603
    %v642 = vpack.c.bf16 %v605, %v604
    %v643 = vpack.c.bf16 %v607, %v606
    %v644 = vpack.c.bf16 %v609, %v608
    %v645 = vpack.c.bf16 %v611, %v610
    %v646 = vpack.c.bf16 %v613, %v612
    %v647 = vpack.c.bf16 %v615, %v614
    %v648 = vpack.c.bf16 %v617, %v616
    %v649 = vpack.c.bf16 %v619, %v618
    %v650 = vpack.c.bf16 %v621, %v620
    %v651 = vpack.c.bf16 %v623, %v622
    %v652 = vpack.c.bf16 %v625, %v624
    %v653 = vpack.c.bf16 %v627, %v626
    %v654 = vpack.c.bf16 %v629, %v628
    %v655 = vpack.c.bf16 %v631, %v630
    %v656 = vpack.c.bf16 %v633, %v632
    %v657 = vpack.c.bf16 %v635, %v634
    %v658 = vpack.c.bf16 %v637, %v636
    %v659 = vpack.c.bf16 %v639, %v638
    %v660 = vpack.c.bf16 %v641, %v640
    %v680 = vunpack.c.l.b16 %v642
    %v681 = vunpack.c.h.b16 %v642
    %v682 = vunpack.c.l.b16 %v643
    %v683 = vunpack.c.h.b16 %v643
    %v684 = vunpack.c.l.b16 %v644
    %v685 = vunpack.c.h.b16 %v644
    %v686 = vunpack.c.l.b16 %v645
    %v687 = vunpack.c.h.b16 %v645
    %v688 = vunpack.c.l.b16 %v646
    %v689 = vunpack.c.h.b16 %v646
    %v690 = vunpack.c.l.b16 %v647
    %v691 = vunpack.c.h.b16 %v647
    %v692 = vunpack.c.l.b16 %v648
    %v693 = vunpack.c.h.b16 %v648
    %v694 = vunpack.c.l.b16 %v649
    %v695 = vunpack.c.h.b16 %v649
    %v696 = vunpack.c.l.b16 %v650
    %v697 = vunpack.c.h.b16 %v650
    %v698 = vunpack.c.l.b16 %v651
    %v699 = vunpack.c.h.b16 %v651
    %v700 = vunpack.c.l.b16 %v652
    %v701 = vunpack.c.h.b16 %v652
    %v702 = vunpack.c.l.b16 %v653
    %v703 = vunpack.c.h.b16 %v653
    %v704 = vunpack.c.l.b16 %v654
    %v705 = vunpack.c.h.b16 %v654
    %v706 = vunpack.c.l.b16 %v655
    %v707 = vunpack.c.h.b16 %v655
    %v708 = vunpack.c.l.b16 %v656
    %v709 = vunpack.c.h.b16 %v656
    %v710 = vunpack.c.l.b16 %v657
    %v711 = vunpack.c.h.b16 %v657
    %v712 = vunpack.c.l.b16 %v658
    %v713 = vunpack.c.h.b16 %v658
    %v714 = vunpack.c.l.b16 %v659
    %v715 = vunpack.c.h.b16 %v659
    %v716 = vunpack.c.l.b16 %v660
    %v717 = vunpack.c.h.b16 %v660
    %v718 = vpack.c.b16 %v680, %v680
    %v719 = vpack.c.b16 %v681, %v681
    %v720 = vpack.c.b16 %v682, %v682
    %v721 = vpack.c.b16 %v683, %v683
    %v722 = vpack.c.b16 %v684, %v684
    %v723 = vpack.c.b16 %v685, %v685
    %v724 = vpack.c.b16 %v686, %v686
    %v725 = vpack.c.b16 %v687, %v687
    %v726 = vpack.c.b16 %v688, %v688
    %v727 = vpack.c.b16 %v689, %v689
    %v728 = vpack.c.b16 %v690, %v690
    %v729 = vpack.c.b16 %v691, %v691
    %v730 = vpack.c.b16 %v692, %v692
    %v731 = vpack.c.b16 %v693, %v693
    %v732 = vpack.c.b16 %v694, %v694
    %v733 = vpack.c.b16 %v695, %v695
    %v734 = vpack.c.b16 %v696, %v696
    %v735 = vpack.c.b16 %v697, %v697
    %v736 = vpack.c.b16 %v698, %v698
    %v737 = vpack.c.b16 %v699, %v699
    %v738 = vpack.c.b16 %v700, %v700
    %v739 = vpack.c.b16 %v701, %v701
    %v740 = vpack.c.b16 %v702, %v702
    %v741 = vpack.c.b16 %v703, %v703
    %v742 = vpack.c.b16 %v704, %v704
    %v743 = vpack.c.b16 %v705, %v705
    %v744 = vpack.c.b16 %v706, %v706
    %v745 = vpack.c.b16 %v707, %v707
    %v746 = vpack.c.b16 %v708, %v708
    %v747 = vpack.c.b16 %v709, %v709
    %v748 = vpack.c.b16 %v710, %v710
    %v749 = vpack.c.b16 %v711, %v711
    %v750 = vpack.c.b16 %v712, %v712
    %v751 = vpack.c.b16 %v713, %v713
    %v752 = vpack.c.b16 %v714, %v714
    %v753 = vpack.c.b16 %v715, %v715
    %v754 = vpack.c.b16 %v716, %v716
    %v755 = vpack.c.b16 %v717, %v717
    %794 = vst [vmem:[#allocation7] sm:$0xf] %v718
    %795 = vst [vmem:[#allocation7 + $0x4] sm:$0xf] %v719
    %796 = vst [vmem:[#allocation7 + $0x8] sm:$0xf] %v720
    %797 = vst [vmem:[#allocation7 + $0xc] sm:$0xf] %v721
    %798 = vst [vmem:[#allocation7 + $0x10] sm:$0xf] %v722
    %799 = vst [vmem:[#allocation7 + $0x14] sm:$0xf] %v723
    %800 = vst [vmem:[#allocation7 + $0x18] sm:$0xf] %v724
    %801 = vst [vmem:[#allocation7 + $0x1c] sm:$0xf] %v725
    %802 = vst [vmem:[#allocation7 + $0x20] sm:$0xf] %v726
    %803 = vst [vmem:[#allocation7 + $0x24] sm:$0xf] %v727
    %804 = vst [vmem:[#allocation7 + $0x28] sm:$0xf] %v728
    %805 = vst [vmem:[#allocation7 + $0x2c] sm:$0xf] %v729
    %806 = vst [vmem:[#allocation7 + $0x30] sm:$0xf] %v730
    %807 = vst [vmem:[#allocation7 + $0x34] sm:$0xf] %v731
    %808 = vst [vmem:[#allocation7 + $0x38] sm:$0xf] %v732
    %809 = vst [vmem:[#allocation7 + $0x3c] sm:$0xf] %v733
    %810 = vst [vmem:[#allocation7 + $0x40] sm:$0xf] %v734
    %811 = vst [vmem:[#allocation7 + $0x44] sm:$0xf] %v735
    %812 = vst [vmem:[#allocation7 + $0x48] sm:$0xf] %v736
    %813 = vst [vmem:[#allocation7 + $0x4c] sm:$0xf] %v737
    %814 = vst [vmem:[#allocation7 + $0x50] sm:$0xf] %v738
    %815 = vst [vmem:[#allocation7 + $0x54] sm:$0xf] %v739
    %816 = vst [vmem:[#allocation7 + $0x58] sm:$0xf] %v740
    %817 = vst [vmem:[#allocation7 + $0x5c] sm:$0xf] %v741
    %818 = vst [vmem:[#allocation7 + $0x60] sm:$0xf] %v742
    %819 = vst [vmem:[#allocation7 + $0x64] sm:$0xf] %v743
    %820 = vst [vmem:[#allocation7 + $0x68] sm:$0xf] %v744
    %821 = vst [vmem:[#allocation7 + $0x6c] sm:$0xf] %v745
    %822 = vst [vmem:[#allocation7 + $0x70] sm:$0xf] %v746
    %823 = vst [vmem:[#allocation7 + $0x74] sm:$0xf] %v747
    %824 = vst [vmem:[#allocation7 + $0x78] sm:$0xf] %v748
    %825 = vst [vmem:[#allocation7 + $0x7c] sm:$0xf] %v749
    %826 = vst [vmem:[#allocation7 + $0x80] sm:$0xf] %v750
    %827 = vst [vmem:[#allocation7 + $0x84] sm:$0xf] %v751
    %828 = vst [vmem:[#allocation7 + $0x88] sm:$0xf] %v752
    %829 = vst [vmem:[#allocation7 + $0x8c] sm:$0xf] %v753
    %830 = vst [vmem:[#allocation7 + $0x90] sm:$0xf] %v754
    %831 = vst [vmem:[#allocation7 + $0x94] sm:$0xf] %v755
    // Predicated region
    $region22: #{tpu_custom_call.1} parent=1 // pred_check
      _
    $region23: #{tpu_custom_call.1} parent=1 // pred_check_branch
      %833 = sbr.rel (0) target = $region25
    $region24: #{tpu_custom_call.1} parent=1 // pred_region
      %s835 = ssub.s32 2432, 2432
      %836 = vsyncadd [#allocation4], %s835
      %s837 = sshll.u32 [#allocation7], 4
      %s838 = int_to_ptr.vmem [resolvable:$true] %s837
      %843 = dma.vmem_to_hbm [thread:$0]  %s838, 2432, %s3, [#allocation4], 64, 64, 4
    $region25: #{tpu_custom_call.1} parent=1 // pred_fallthru
      _
    // Predicated region
    $region26: #{tpu_custom_call.1} parent=1 // pred_check
      _
    $region27: #{tpu_custom_call.1} parent=1 // pred_check_branch
      %845 = sbr.rel (0) target = $region29
    $region28: #{tpu_custom_call.1} parent=1 // pred_region
      %846 = dma.done [#allocation4], 2432
    $region29: #{tpu_custom_call.1} parent=1 // pred_fallthru
      _
    %847 = vsyncpa [#allocation3], 1
    %848 = vsyncpa [#allocation6], 1
    %849 = vsyncpa [#allocation4], 1

</llo_original>
